<compile_context>
chip_gen: v7x
topology: tpu7x:2x2x1
jax: 0.10.0
libtpu: 0.0.40
codegen_flags: <defaults>
</compile_context>

<pallas_src>
from functools import partial

import jax
import jax.numpy as jnp
from jax import lax
from jax.experimental import pallas as pl
from jax.experimental.pallas import tpu as pltpu

BN_EPS = 1e-5


def decoder_kernel(x_ref, w1_ref, gamma_ref, beta_ref, w2_ref, b2_ref,
                   o_ref, xpad_ref, act_ref, *, H, W, HALO):
    """DecoderModule forward; single invocation, everything VMEM resident.

    x_ref     : (N, Cin, P)        input, P = H*W on the lane axis
    w1_ref    : (9, Cmid, Cin)     conv1 weight, tap-major (t = ky*3 + kx)
    gamma_ref : (Cmid, 1)          BN weight
    beta_ref  : (Cmid, 1)          BN bias
    w2_ref    : (Cmid, 1)          conv2 (1x1) weight
    b2_ref    : (1, 1)             conv2 bias
    o_ref     : (N, P)             output (lane-dense)
    xpad_ref  : (Cin, P + 2*HALO)  VMEM scratch with zero halo
    act_ref   : (N, Cmid, P)       VMEM scratch holding conv1 activations
    """
    N, Cin, P = x_ref.shape
    Cmid = w1_ref.shape[1]

    # Horizontal wraparound masks only (the zero halo handles vertical
    # out-of-range reads for free).  Two distinct lane masks total.
    ww = lax.broadcasted_iota(jnp.int32, (1, P), 1) % W
    mask_left = ww >= 1            # valid lanes for dx = -1
    mask_right = ww < (W - 1)      # valid lanes for dx = +1

    # Zero only the two halo strips; the interior is overwritten per image.
    xpad_ref[:, pl.ds(0, HALO)] = jnp.zeros((Cin, HALO), jnp.float32)
    xpad_ref[:, pl.ds(HALO + P, HALO)] = jnp.zeros((Cin, HALO), jnp.float32)

    inv_count = 1.0 / float(N * P)

    # ---- pass 1: conv1 (3x3, pad=1) per image; accumulate per-channel sum ----
    # Channels on sublanes (contraction axis), H*W on lanes (MXU columns).
    # NOTE: conv1 bias is intentionally omitted — it cancels exactly in the
    # BatchNorm mean subtraction.
    def conv1_body(n, sum_c):
        xpad_ref[:, pl.ds(HALO, P)] = x_ref[n]            # aligned interior store
        a = jnp.zeros((Cmid, P), jnp.float32)
        for kx in range(3):                               # group taps by column
            dx = kx - 1
            g = jnp.zeros((Cmid, P), jnp.float32)
            for ky in range(3):
                shift = (ky - 1) * W + dx
                tap = xpad_ref[:, pl.ds(HALO + shift, P)]  # shifted read (Cin, P)
                g = g + jnp.dot(w1_ref[ky * 3 + kx], tap,
                                preferred_element_type=jnp.float32)
            # Per-lane mask commutes through the channel contraction, so it is
            # applied once per kx group on the (Cmid, P) result.
            if dx == -1:
                g = jnp.where(mask_left, g, 0.0)
            elif dx == 1:
                g = jnp.where(mask_right, g, 0.0)
            a = a + g
        act_ref[n] = a                                    # (Cmid, P) f32
        return sum_c + jnp.sum(a, axis=1, keepdims=True)

    sum_c = lax.fori_loop(0, N, conv1_body,
                          jnp.zeros((Cmid, 1), jnp.float32))
    mean = sum_c * inv_count                              # (Cmid, 1)

    # ---- BatchNorm statistics: two-pass variance E[(x-mean)^2] ---------------
    act = act_ref[...]                                    # (N, Cmid, P)
    d = act - mean[None, :, :]
    var = jnp.sum(jnp.sum(d * d, axis=2, keepdims=True), axis=0) * inv_count
    scale = gamma_ref[...] * lax.rsqrt(var + BN_EPS)      # (Cmid, 1)
    shift_ = beta_ref[...] - mean * scale                 # (Cmid, 1)

    # ---- BN + ReLU apply, then conv2 (1x1, Cmid -> 1), vectorized over N -----
    # Single broadcast of scale / shift / w2, single dense (N, P) store.
    y = jnp.maximum(act * scale[None, :, :] + shift_[None, :, :], 0.0)
    out = jnp.sum(y * w2_ref[...][None, :, :], axis=1) + b2_ref[...]   # (N, P)
    o_ref[...] = out


@jax.jit
def decoder_forward(x_nchw, params):
    """x_nchw: (N, Cin, H, W) float32 -> (N, 1, H, W), same as the torch module."""
    N, Cin, H, W = x_nchw.shape
    Cmid = params['w1'].shape[0]
    P = H * W
    # Halo sized from W so shifted reads never leave the scratch (W >= 128 safe).
    HALO = ((W + 1 + 127) // 128) * 128

    # Free, contiguous reshapes only — no pad / transpose HBM passes.
    x_flat = x_nchw.reshape(N, Cin, P)
    # conv1 weight (Cmid, Cin, 3, 3) -> tap-major (9, Cmid, Cin); tiny.
    w1_taps = jnp.transpose(params['w1'], (2, 3, 0, 1)).reshape(9, Cmid, Cin)
    gamma = params['gamma'].reshape(Cmid, 1)
    beta = params['beta'].reshape(Cmid, 1)
    w2 = params['w2'].reshape(Cmid, 1)
    b2 = params['b2'].reshape(1, 1)

    out_flat = pl.pallas_call(
        partial(decoder_kernel, H=H, W=W, HALO=HALO),
        out_shape=jax.ShapeDtypeStruct((N, P), jnp.float32),
        in_specs=[pl.BlockSpec(memory_space=pltpu.MemorySpace.VMEM)] * 6,
        out_specs=pl.BlockSpec(memory_space=pltpu.MemorySpace.VMEM),
        scratch_shapes=[
            pltpu.VMEM((Cin, P + 2 * HALO), jnp.float32),   # zero-halo image
            pltpu.VMEM((N, Cmid, P), jnp.float32),          # conv1 activations
        ],
    )(x_flat, w1_taps, gamma, beta, w2, b2)

    return out_flat.reshape(N, 1, H, W)


def decoder_reference(x_nchw, params):
    """Pure-JAX reference mirroring the PyTorch forward (training mode)."""
    y = lax.conv_general_dilated(
        x_nchw, params['w1'], window_strides=(1, 1), padding=((1, 1), (1, 1)),
        dimension_numbers=('NCHW', 'OIHW', 'NCHW'))
    y = y + params['b1'].reshape(1, -1, 1, 1)
    mean = jnp.mean(y, axis=(0, 2, 3), keepdims=True)
    var = jnp.mean((y - mean) ** 2, axis=(0, 2, 3), keepdims=True)
    y = (y - mean) / jnp.sqrt(var + BN_EPS)
    y = y * params['gamma'].reshape(1, -1, 1, 1) + params['beta'].reshape(1, -1, 1, 1)
    y = jnp.maximum(y, 0.0)
    out = jnp.einsum('nchw,c->nhw', y, params['w2'])[:, None, :, :]
    return out + params['b2'].reshape(1, 1, 1, 1)


def init_params(key, in_channels):
    """Deterministic synthetic parameters matching DecoderModule.__init__ shapes."""
    cmid = in_channels // 2
    ks = jax.random.split(key, 6)
    return {
        # conv1 weight, torch OIHW layout (cmid, cin, 3, 3)
        'w1': 0.2 * jax.random.normal(ks[0], (cmid, in_channels, 3, 3), jnp.float32),
        # conv1 bias: kept for module fidelity / the reference; it cancels in
        # BN's mean subtraction, so the Pallas kernel does not consume it.
        'b1': 0.1 * jax.random.normal(ks[1], (cmid,), jnp.float32),
        # BatchNorm2d affine params
        'gamma': 1.0 + 0.1 * jax.random.normal(ks[2], (cmid,), jnp.float32),
        'beta': 0.1 * jax.random.normal(ks[3], (cmid,), jnp.float32),
        # conv2: torch weight (1, cmid, 1, 1) stored squeezed as (cmid,)
        'w2': 0.2 * jax.random.normal(ks[4], (cmid,), jnp.float32),
        'b2': 0.1 * jax.random.normal(ks[5], (1,), jnp.float32),
    }


if __name__ == "__main__":
    key = jax.random.PRNGKey(0)
    k_x, k_p = jax.random.split(key)

    N, Cin, H, W = 2, 4, 16, 16          # small shapes consistent with the module
    x = jax.random.normal(k_x, (N, Cin, H, W), jnp.float32)
    params = init_params(k_p, Cin)

    out = jax.block_until_ready(decoder_forward(x, params))
    ref = jax.block_until_ready(decoder_reference(x, params))

    assert out.shape == (N, 1, H, W), out.shape
    assert jnp.allclose(out, ref, atol=1e-3, rtol=1e-3), \
        float(jnp.max(jnp.abs(out - ref)))

    print("KERNEL_OK")
</pallas_src>

<mosaic_0001>
module attributes {stable_mosaic.version = 11 : i64} {
  func.func @decoder_kernel(%arg0: memref<2x4x256xf32, #tpu.memory_space<vmem>>, %arg1: memref<9x2x4xf32, #tpu.memory_space<vmem>>, %arg2: memref<2x1xf32, #tpu.memory_space<vmem>>, %arg3: memref<2x1xf32, #tpu.memory_space<vmem>>, %arg4: memref<2x1xf32, #tpu.memory_space<vmem>>, %arg5: memref<1x1xf32, #tpu.memory_space<vmem>>, %arg6: memref<2x256xf32, #tpu.memory_space<vmem>>, %arg7: memref<4x512xf32, #tpu.memory_space<vmem>>, %arg8: memref<2x2x256xf32, #tpu.memory_space<vmem>>) attributes {dimension_semantics = [], scalar_prefetch = 0 : i64, scratch_operands = 2 : i64, tpu.core_type = #tpu.core_type<tc>} {
    %0 = tpu.iota {dimensions = array<i32: 1>} : vector<1x256xi32>
    %c16_i32 = arith.constant 16 : i32
    %c0_i32 = arith.constant 0 : i32
    %1 = arith.cmpi eq, %c16_i32, %c0_i32 : i32
    %c1_i32 = arith.constant 1 : i32
    %2 = arith.select %1, %c1_i32, %c16_i32 : i32
    %3 = vector.broadcast %2 : i32 to vector<1x256xi32>
    %4 = arith.remsi %0, %3 : vector<1x256xi32>
    %c0_i32_0 = arith.constant 0 : i32
    %5 = vector.broadcast %c0_i32_0 : i32 to vector<1x256xi32>
    %6 = arith.cmpi ne, %4, %5 : vector<1x256xi32>
    %c0_i32_1 = arith.constant 0 : i32
    %7 = vector.broadcast %c0_i32_1 : i32 to vector<1x256xi32>
    %8 = arith.cmpi slt, %4, %7 : vector<1x256xi32>
    %c0_i32_2 = arith.constant 0 : i32
    %9 = arith.cmpi slt, %2, %c0_i32_2 : i32
    %10 = vector.broadcast %9 : i1 to vector<1x256xi1>
    %11 = vector.broadcast %10 : vector<1x256xi1> to vector<1x256xi1>
    %12 = arith.xori %8, %11 : vector<1x256xi1>
    %13 = arith.andi %12, %6 : vector<1x256xi1>
    %14 = vector.broadcast %2 : i32 to vector<1x256xi32>
    %15 = arith.addi %4, %14 : vector<1x256xi32>
    %16 = arith.select %13, %15, %4 : vector<1x256xi1>, vector<1x256xi32>
    %c1_i32_3 = arith.constant 1 : i32
    %17 = vector.broadcast %c1_i32_3 : i32 to vector<1x256xi32>
    %18 = arith.cmpi sge, %16, %17 : vector<1x256xi32>
    %c15_i32 = arith.constant 15 : i32
    %19 = vector.broadcast %c15_i32 : i32 to vector<1x256xi32>
    %20 = arith.cmpi slt, %16, %19 : vector<1x256xi32>
    %cst = arith.constant 0.000000e+00 : f32
    %21 = vector.broadcast %cst : f32 to vector<4x128xf32>
    %c0 = arith.constant 0 : index
    %c0_4 = arith.constant 0 : index
    %22 = vector.load %arg7[%c0, %c0_4] : memref<4x512xf32, #tpu.memory_space<vmem>>, vector<4x128xf32>
    tpu.vector_store %arg7[%c0, %c0_4], %21 {strides = array<i32>} : memref<4x512xf32, #tpu.memory_space<vmem>>, vector<4x128xf32>,
    %cst_5 = arith.constant 0.000000e+00 : f32
    %23 = vector.broadcast %cst_5 : f32 to vector<4x128xf32>
    %c0_6 = arith.constant 0 : index
    %c384 = arith.constant 384 : index
    %24 = vector.load %arg7[%c0_6, %c384] : memref<4x512xf32, #tpu.memory_space<vmem>>, vector<4x128xf32>
    tpu.vector_store %arg7[%c0_6, %c384], %23 {strides = array<i32>} : memref<4x512xf32, #tpu.memory_space<vmem>>, vector<4x128xf32>,
    %cst_7 = arith.constant 0.000000e+00 : f32
    %25 = vector.broadcast %cst_7 : f32 to vector<2x1xf32>
    %c0_i32_8 = arith.constant 0 : i32
    %c2_i32 = arith.constant 2 : i32
    %26 = arith.addi %c0_i32_8, %c2_i32 : i32
    %c1_i32_9 = arith.constant 1 : i32
    %27 = scf.for %arg9 = %c0_i32_8 to %26 step %c1_i32_9 iter_args(%arg10 = %25) -> (vector<2x1xf32>)  : i32 {
      %65 = arith.index_cast %arg9 : i32 to index
      %c0_31 = arith.constant 0 : index
      %c0_32 = arith.constant 0 : index
      %66 = vector.load %arg0[%65, %c0_31, %c0_32] : memref<2x4x256xf32, #tpu.memory_space<vmem>>, vector<1x4x256xf32>
      %67 = vector.shape_cast %66 : vector<1x4x256xf32> to vector<4x256xf32>
      %c0_33 = arith.constant 0 : index
      %c128 = arith.constant 128 : index
      %68 = vector.load %arg7[%c0_33, %c128] : memref<4x512xf32, #tpu.memory_space<vmem>>, vector<4x256xf32>
      tpu.vector_store %arg7[%c0_33, %c128], %67 {strides = array<i32>} : memref<4x512xf32, #tpu.memory_space<vmem>>, vector<4x256xf32>,
      %cst_34 = arith.constant 0.000000e+00 : f32
      %69 = vector.broadcast %cst_34 : f32 to vector<2x256xf32>
      %cst_35 = arith.constant 0.000000e+00 : f32
      %70 = vector.broadcast %cst_35 : f32 to vector<2x256xf32>
      %c0_36 = arith.constant 0 : index
      %c111 = arith.constant 111 : index
      %71 = vector.load %arg7[%c0_36, %c111] : memref<4x512xf32, #tpu.memory_space<vmem>>, vector<4x256xf32>
      %c0_37 = arith.constant 0 : index
      %c0_38 = arith.constant 0 : index
      %c0_39 = arith.constant 0 : index
      %72 = vector.load %arg1[%c0_37, %c0_38, %c0_39] : memref<9x2x4xf32, #tpu.memory_space<vmem>>, vector<1x2x4xf32>
      %73 = vector.shape_cast %72 : vector<1x2x4xf32> to vector<2x4xf32>
      %cst_40 = arith.constant dense<0.000000e+00> : vector<2x256xf32>
      %74 = tpu.matmul %73, %71, %cst_40 {dimension_numbers = #tpu.dot_dimension_numbers<[1], [0], [0], [1], [0, 0, 1, 1], [], []>} : vector<2x4xf32>, vector<4x256xf32>, vector<2x256xf32> -> vector<2x256xf32>
      %75 = arith.addf %70, %74 : vector<2x256xf32>
      %c0_41 = arith.constant 0 : index
      %c127 = arith.constant 127 : index
      %76 = vector.load %arg7[%c0_41, %c127] : memref<4x512xf32, #tpu.memory_space<vmem>>, vector<4x256xf32>
      %c3 = arith.constant 3 : index
      %c0_42 = arith.constant 0 : index
      %c0_43 = arith.constant 0 : index
      %77 = vector.load %arg1[%c3, %c0_42, %c0_43] : memref<9x2x4xf32, #tpu.memory_space<vmem>>, vector<1x2x4xf32>
      %78 = vector.shape_cast %77 : vector<1x2x4xf32> to vector<2x4xf32>
      %cst_44 = arith.constant dense<0.000000e+00> : vector<2x256xf32>
      %79 = tpu.matmul %78, %76, %cst_44 {dimension_numbers = #tpu.dot_dimension_numbers<[1], [0], [0], [1], [0, 0, 1, 1], [], []>} : vector<2x4xf32>, vector<4x256xf32>, vector<2x256xf32> -> vector<2x256xf32>
      %80 = arith.addf %75, %79 : vector<2x256xf32>
      %c0_45 = arith.constant 0 : index
      %c143 = arith.constant 143 : index
      %81 = vector.load %arg7[%c0_45, %c143] : memref<4x512xf32, #tpu.memory_space<vmem>>, vector<4x256xf32>
      %c6 = arith.constant 6 : index
      %c0_46 = arith.constant 0 : index
      %c0_47 = arith.constant 0 : index
      %82 = vector.load %arg1[%c6, %c0_46, %c0_47] : memref<9x2x4xf32, #tpu.memory_space<vmem>>, vector<1x2x4xf32>
      %83 = vector.shape_cast %82 : vector<1x2x4xf32> to vector<2x4xf32>
      %cst_48 = arith.constant dense<0.000000e+00> : vector<2x256xf32>
      %84 = tpu.matmul %83, %81, %cst_48 {dimension_numbers = #tpu.dot_dimension_numbers<[1], [0], [0], [1], [0, 0, 1, 1], [], []>} : vector<2x4xf32>, vector<4x256xf32>, vector<2x256xf32> -> vector<2x256xf32>
      %85 = arith.addf %80, %84 : vector<2x256xf32>
      %cst_49 = arith.constant 0.000000e+00 : f32
      %86 = vector.shape_cast %18 : vector<1x256xi1> to vector<1x256xi1>
      %87 = vector.broadcast %86 : vector<1x256xi1> to vector<2x256xi1>
      %88 = vector.broadcast %cst_49 : f32 to vector<2x256xf32>
      %89 = arith.select %87, %85, %88 : vector<2x256xi1>, vector<2x256xf32>
      %90 = arith.addf %69, %89 : vector<2x256xf32>
      %cst_50 = arith.constant 0.000000e+00 : f32
      %91 = vector.broadcast %cst_50 : f32 to vector<2x256xf32>
      %c0_51 = arith.constant 0 : index
      %c112 = arith.constant 112 : index
      %92 = vector.load %arg7[%c0_51, %c112] : memref<4x512xf32, #tpu.memory_space<vmem>>, vector<4x256xf32>
      %c1 = arith.constant 1 : index
      %c0_52 = arith.constant 0 : index
      %c0_53 = arith.constant 0 : index
      %93 = vector.load %arg1[%c1, %c0_52, %c0_53] : memref<9x2x4xf32, #tpu.memory_space<vmem>>, vector<1x2x4xf32>
      %94 = vector.shape_cast %93 : vector<1x2x4xf32> to vector<2x4xf32>
      %cst_54 = arith.constant dense<0.000000e+00> : vector<2x256xf32>
      %95 = tpu.matmul %94, %92, %cst_54 {dimension_numbers = #tpu.dot_dimension_numbers<[1], [0], [0], [1], [0, 0, 1, 1], [], []>} : vector<2x4xf32>, vector<4x256xf32>, vector<2x256xf32> -> vector<2x256xf32>
      %96 = arith.addf %91, %95 : vector<2x256xf32>
      %c0_55 = arith.constant 0 : index
      %c128_56 = arith.constant 128 : index
      %97 = vector.load %arg7[%c0_55, %c128_56] : memref<4x512xf32, #tpu.memory_space<vmem>>, vector<4x256xf32>
      %c4 = arith.constant 4 : index
      %c0_57 = arith.constant 0 : index
      %c0_58 = arith.constant 0 : index
      %98 = vector.load %arg1[%c4, %c0_57, %c0_58] : memref<9x2x4xf32, #tpu.memory_space<vmem>>, vector<1x2x4xf32>
      %99 = vector.shape_cast %98 : vector<1x2x4xf32> to vector<2x4xf32>
      %cst_59 = arith.constant dense<0.000000e+00> : vector<2x256xf32>
      %100 = tpu.matmul %99, %97, %cst_59 {dimension_numbers = #tpu.dot_dimension_numbers<[1], [0], [0], [1], [0, 0, 1, 1], [], []>} : vector<2x4xf32>, vector<4x256xf32>, vector<2x256xf32> -> vector<2x256xf32>
      %101 = arith.addf %96, %100 : vector<2x256xf32>
      %c0_60 = arith.constant 0 : index
      %c144 = arith.constant 144 : index
      %102 = vector.load %arg7[%c0_60, %c144] : memref<4x512xf32, #tpu.memory_space<vmem>>, vector<4x256xf32>
      %c7 = arith.constant 7 : index
      %c0_61 = arith.constant 0 : index
      %c0_62 = arith.constant 0 : index
      %103 = vector.load %arg1[%c7, %c0_61, %c0_62] : memref<9x2x4xf32, #tpu.memory_space<vmem>>, vector<1x2x4xf32>
      %104 = vector.shape_cast %103 : vector<1x2x4xf32> to vector<2x4xf32>
      %cst_63 = arith.constant dense<0.000000e+00> : vector<2x256xf32>
      %105 = tpu.matmul %104, %102, %cst_63 {dimension_numbers = #tpu.dot_dimension_numbers<[1], [0], [0], [1], [0, 0, 1, 1], [], []>} : vector<2x4xf32>, vector<4x256xf32>, vector<2x256xf32> -> vector<2x256xf32>
      %106 = arith.addf %101, %105 : vector<2x256xf32>
      %107 = arith.addf %90, %106 : vector<2x256xf32>
      %cst_64 = arith.constant 0.000000e+00 : f32
      %108 = vector.broadcast %cst_64 : f32 to vector<2x256xf32>
      %c0_65 = arith.constant 0 : index
      %c113 = arith.constant 113 : index
      %109 = vector.load %arg7[%c0_65, %c113] : memref<4x512xf32, #tpu.memory_space<vmem>>, vector<4x256xf32>
      %c2 = arith.constant 2 : index
      %c0_66 = arith.constant 0 : index
      %c0_67 = arith.constant 0 : index
      %110 = vector.load %arg1[%c2, %c0_66, %c0_67] : memref<9x2x4xf32, #tpu.memory_space<vmem>>, vector<1x2x4xf32>
      %111 = vector.shape_cast %110 : vector<1x2x4xf32> to vector<2x4xf32>
      %cst_68 = arith.constant dense<0.000000e+00> : vector<2x256xf32>
      %112 = tpu.matmul %111, %109, %cst_68 {dimension_numbers = #tpu.dot_dimension_numbers<[1], [0], [0], [1], [0, 0, 1, 1], [], []>} : vector<2x4xf32>, vector<4x256xf32>, vector<2x256xf32> -> vector<2x256xf32>
      %113 = arith.addf %108, %112 : vector<2x256xf32>
      %c0_69 = arith.constant 0 : index
      %c129 = arith.constant 129 : index
      %114 = vector.load %arg7[%c0_69, %c129] : memref<4x512xf32, #tpu.memory_space<vmem>>, vector<4x256xf32>
      %c5 = arith.constant 5 : index
      %c0_70 = arith.constant 0 : index
      %c0_71 = arith.constant 0 : index
      %115 = vector.load %arg1[%c5, %c0_70, %c0_71] : memref<9x2x4xf32, #tpu.memory_space<vmem>>, vector<1x2x4xf32>
      %116 = vector.shape_cast %115 : vector<1x2x4xf32> to vector<2x4xf32>
      %cst_72 = arith.constant dense<0.000000e+00> : vector<2x256xf32>
      %117 = tpu.matmul %116, %114, %cst_72 {dimension_numbers = #tpu.dot_dimension_numbers<[1], [0], [0], [1], [0, 0, 1, 1], [], []>} : vector<2x4xf32>, vector<4x256xf32>, vector<2x256xf32> -> vector<2x256xf32>
      %118 = arith.addf %113, %117 : vector<2x256xf32>
      %c0_73 = arith.constant 0 : index
      %c145 = arith.constant 145 : index
      %119 = vector.load %arg7[%c0_73, %c145] : memref<4x512xf32, #tpu.memory_space<vmem>>, vector<4x256xf32>
      %c8 = arith.constant 8 : index
      %c0_74 = arith.constant 0 : index
      %c0_75 = arith.constant 0 : index
      %120 = vector.load %arg1[%c8, %c0_74, %c0_75] : memref<9x2x4xf32, #tpu.memory_space<vmem>>, vector<1x2x4xf32>
      %121 = vector.shape_cast %120 : vector<1x2x4xf32> to vector<2x4xf32>
      %cst_76 = arith.constant dense<0.000000e+00> : vector<2x256xf32>
      %122 = tpu.matmul %121, %119, %cst_76 {dimension_numbers = #tpu.dot_dimension_numbers<[1], [0], [0], [1], [0, 0, 1, 1], [], []>} : vector<2x4xf32>, vector<4x256xf32>, vector<2x256xf32> -> vector<2x256xf32>
      %123 = arith.addf %118, %122 : vector<2x256xf32>
      %cst_77 = arith.constant 0.000000e+00 : f32
      %124 = vector.shape_cast %20 : vector<1x256xi1> to vector<1x256xi1>
      %125 = vector.broadcast %124 : vector<1x256xi1> to vector<2x256xi1>
      %126 = vector.broadcast %cst_77 : f32 to vector<2x256xf32>
      %127 = arith.select %125, %123, %126 : vector<2x256xi1>, vector<2x256xf32>
      %128 = arith.addf %107, %127 : vector<2x256xf32>
      %129 = arith.index_cast %arg9 : i32 to index
      %c0_78 = arith.constant 0 : index
      %c0_79 = arith.constant 0 : index
      %130 = vector.load %arg8[%129, %c0_78, %c0_79] : memref<2x2x256xf32, #tpu.memory_space<vmem>>, vector<1x2x256xf32>
      %131 = vector.shape_cast %130 : vector<1x2x256xf32> to vector<2x256xf32>
      %132 = vector.shape_cast %128 : vector<2x256xf32> to vector<1x2x256xf32>
      tpu.vector_store %arg8[%129, %c0_78, %c0_79], %132 {strides = array<i32>} : memref<2x2x256xf32, #tpu.memory_space<vmem>>, vector<1x2x256xf32>,
      %cst_80 = arith.constant dense<0.000000e+00> : vector<2xf32>
      %133 = vector.multi_reduction <add>, %128, %cst_80 [1] : vector<2x256xf32> to vector<2xf32>
      %134 = vector.shape_cast %133 : vector<2xf32> to vector<2x1xf32>
      %135 = arith.addf %arg10, %134 : vector<2x1xf32>
      scf.yield %135 : vector<2x1xf32>
    }
    %c2_i32_10 = arith.constant 2 : i32
    %cst_11 = arith.constant 0.001953125 : f32
    %28 = vector.broadcast %cst_11 : f32 to vector<2x1xf32>
    %29 = arith.mulf %27, %28 : vector<2x1xf32>
    %c0_12 = arith.constant 0 : index
    %c0_13 = arith.constant 0 : index
    %c0_14 = arith.constant 0 : index
    %30 = vector.load %arg8[%c0_12, %c0_13, %c0_14] : memref<2x2x256xf32, #tpu.memory_space<vmem>>, vector<2x2x256xf32>
    %31 = vector.shape_cast %29 : vector<2x1xf32> to vector<1x2x1xf32>
    %32 = vector.broadcast %31 : vector<1x2x1xf32> to vector<2x2x256xf32>
    %33 = arith.subf %30, %32 : vector<2x2x256xf32>
    %34 = arith.mulf %33, %33 : vector<2x2x256xf32>
    %cst_15 = arith.constant dense<0.000000e+00> : vector<2x2xf32>
    %35 = vector.multi_reduction <add>, %34, %cst_15 [2] : vector<2x2x256xf32> to vector<2x2xf32>
    %36 = vector.shape_cast %35 : vector<2x2xf32> to vector<2x2x1xf32>
    %cst_16 = arith.constant dense<0.000000e+00> : vector<2x1xf32>
    %37 = vector.multi_reduction <add>, %36, %cst_16 [0] : vector<2x2x1xf32> to vector<2x1xf32>
    %cst_17 = arith.constant 0.001953125 : f32
    %38 = vector.broadcast %cst_17 : f32 to vector<2x1xf32>
    %39 = arith.mulf %37, %38 : vector<2x1xf32>
    %c0_18 = arith.constant 0 : index
    %c0_19 = arith.constant 0 : index
    %40 = vector.load %arg2[%c0_18, %c0_19] : memref<2x1xf32, #tpu.memory_space<vmem>>, vector<2x1xf32>
    %cst_20 = arith.constant 9.99999974E-6 : f32
    %41 = vector.broadcast %cst_20 : f32 to vector<2x1xf32>
    %42 = arith.addf %39, %41 : vector<2x1xf32>
    %43 = math.rsqrt %42 : vector<2x1xf32>
    %44 = arith.mulf %40, %43 : vector<2x1xf32>
    %c0_21 = arith.constant 0 : index
    %c0_22 = arith.constant 0 : index
    %45 = vector.load %arg3[%c0_21, %c0_22] : memref<2x1xf32, #tpu.memory_space<vmem>>, vector<2x1xf32>
    %46 = arith.mulf %29, %44 : vector<2x1xf32>
    %47 = arith.subf %45, %46 : vector<2x1xf32>
    %48 = vector.shape_cast %44 : vector<2x1xf32> to vector<1x2x1xf32>
    %49 = vector.broadcast %48 : vector<1x2x1xf32> to vector<2x2x256xf32>
    %50 = arith.mulf %30, %49 : vector<2x2x256xf32>
    %51 = vector.shape_cast %47 : vector<2x1xf32> to vector<1x2x1xf32>
    %52 = vector.broadcast %51 : vector<1x2x1xf32> to vector<2x2x256xf32>
    %53 = arith.addf %50, %52 : vector<2x2x256xf32>
    %cst_23 = arith.constant 0.000000e+00 : f32
    %54 = vector.broadcast %cst_23 : f32 to vector<2x2x256xf32>
    %55 = arith.maximumf %53, %54 : vector<2x2x256xf32>
    %c0_24 = arith.constant 0 : index
    %c0_25 = arith.constant 0 : index
    %56 = vector.load %arg4[%c0_24, %c0_25] : memref<2x1xf32, #tpu.memory_space<vmem>>, vector<2x1xf32>
    %57 = vector.shape_cast %56 : vector<2x1xf32> to vector<1x2x1xf32>
    %58 = vector.broadcast %57 : vector<1x2x1xf32> to vector<2x2x256xf32>
    %59 = arith.mulf %55, %58 : vector<2x2x256xf32>
    %cst_26 = arith.constant dense<0.000000e+00> : vector<2x256xf32>
    %60 = vector.multi_reduction <add>, %59, %cst_26 [1] : vector<2x2x256xf32> to vector<2x256xf32>
    %c0_27 = arith.constant 0 : index
    %c0_28 = arith.constant 0 : index
    %61 = vector.load %arg5[%c0_27, %c0_28] : memref<1x1xf32, #tpu.memory_space<vmem>>, vector<1x1xf32>
    %62 = vector.broadcast %61 : vector<1x1xf32> to vector<2x256xf32>
    %63 = arith.addf %60, %62 : vector<2x256xf32>
    %c0_29 = arith.constant 0 : index
    %c0_30 = arith.constant 0 : index
    %64 = vector.load %arg6[%c0_29, %c0_30] : memref<2x256xf32, #tpu.memory_space<vmem>>, vector<2x256xf32>
    tpu.vector_store %arg6[%c0_29, %c0_30], %63 {strides = array<i32>} : memref<2x256xf32, #tpu.memory_space<vmem>>, vector<2x256xf32>,
    return
  }
}

</mosaic_0001>

<llo_original>
// kernel: decoder_forward.1
$region0: #{decoder_forward.1}
  #allocation0 [shape = 'u32[]', space=smem, size = 0x4, offset = 0x4, fixed_abs, tag = 'smem constant byte address 0x4 - core index']
  #allocation1 [shape = 'u32[144,128]{1,0:T(1,128)}', space=vmem, size = 0x12000, scoped, tag = 'internal scratch']
  #allocation2 [shape = 'f32[4,512]{1,0:T(4,128)}', space=vmem, size = 0x2000, scoped, tag = 'scratch operand']
  #allocation3 [shape = 'f32[2,2,256]{2,1,0:T(2,128)}', space=vmem, size = 0x1000, scoped, tag = 'scratch operand']
  #allocation4 [shape = 'f32[1,1]{1,0:T(1,128)S(1)}', space=vmem, size = 0x200, scoped, tag = 'scoped memory for decoder_forward.1']
  %s0 = inlined_call_operand.vmem [shape: f32[2,4,256], index: 0, kind: input, shape index: {}]
  %s1 = inlined_call_operand.vmem [shape: f32[9,2,4], index: 1, kind: input, shape index: {}]
  %s2 = inlined_call_operand.vmem [shape: f32[2,1], index: 2, kind: input, shape index: {}]
  %s3 = inlined_call_operand.vmem [shape: f32[2,1], index: 3, kind: input, shape index: {}]
  %s4 = inlined_call_operand.vmem [shape: f32[2,1], index: 4, kind: input, shape index: {}]
  %s5 = inlined_call_operand.<no memory space> [shape: f32[1,1], index: 5, kind: input, shape index: {}]
  %s6 = inlined_call_operand.vmem [shape: f32[2,256], index: 6, kind: output, shape index: {}]
  %s7 = sld [smem:[#allocation0]]
  $region41: #{decoder_forward.1} parent=0
    _
  %s9 = ssub.s32 1, %s7
  %s10 = scalar_select 0, %s9, %s7
  %v11 = vstv %s5
  %12 = vst [vmem:[#allocation4] sm:$0x1] %v11
  // Predicated region
  $region2: #{decoder_forward.1} parent=0 // pred_check
    _
  $region3: #{decoder_forward.1} parent=0 // pred_check_branch
    %14 = sbr.rel (0) target = $region5
  $region4: #{decoder_forward.1} parent=0 // pred_region
    _
  $region5: #{decoder_forward.1} parent=0 // pred_fallthru
    _
  // Predicated region
  $region6: #{decoder_forward.1} parent=0 // pred_check
    _
  $region7: #{decoder_forward.1} parent=0 // pred_check_branch
    %16 = sbr.rel (0) target = $region9
  $region8: #{decoder_forward.1} parent=0 // pred_region
    _
  $region9: #{decoder_forward.1} parent=0 // pred_fallthru
    _
  // Predicated region
  $region10: #{decoder_forward.1} parent=0 // pred_check
    _
  $region11: #{decoder_forward.1} parent=0 // pred_check_branch
    %18 = sbr.rel (0) target = $region13
  $region12: #{decoder_forward.1} parent=0 // pred_region
    _
  $region13: #{decoder_forward.1} parent=0 // pred_fallthru
    _
  // Predicated region
  $region14: #{decoder_forward.1} parent=0 // pred_check
    _
  $region15: #{decoder_forward.1} parent=0 // pred_check_branch
    %20 = sbr.rel (0) target = $region17
  $region16: #{decoder_forward.1} parent=0 // pred_region
    _
  $region17: #{decoder_forward.1} parent=0 // pred_fallthru
    _
  // Predicated region
  $region18: #{decoder_forward.1} parent=0 // pred_check
    _
  $region19: #{decoder_forward.1} parent=0 // pred_check_branch
    %22 = sbr.rel (0) target = $region21
  $region20: #{decoder_forward.1} parent=0 // pred_region
    _
  $region21: #{decoder_forward.1} parent=0 // pred_fallthru
    _
  // Predicated region
  $region22: #{decoder_forward.1} parent=0 // pred_check
    _
  $region23: #{decoder_forward.1} parent=0 // pred_check_branch
    %24 = sbr.rel (0) target = $region25
  $region24: #{decoder_forward.1} parent=0 // pred_region
    _
  $region25: #{decoder_forward.1} parent=0 // pred_fallthru
    _
  %v25 = vlaneseq
  %v26 = vand.u32 %v25, 127
  %v27 = vadd.s32 %v26, 128
  %vm28 = vcmp.lt.s32.totalorder %v26, 0
  %v29 = vsub.s32 0, %v26
  %v30 = vsel %vm28, %v29, %v26
  %v31 = vshrl.u32 %v30, 4
  %v32 = vand.u32 %v30, 15
  %v33 = vsub.s32 0, %v32
  %v34 = vsel %vm28, %v33, %v32
  %vm35 = vcmp.lt.s32.totalorder %v27, 0
  %v36 = vsub.s32 0, %v27
  %v37 = vsel %vm35, %v36, %v27
  %v38 = vshrl.u32 %v37, 4
  %v39 = vand.u32 %v37, 15
  %v40 = vsub.s32 0, %v39
  %v41 = vsel %vm35, %v40, %v39
  %vm42 = vcmp.ne.s32.totalorder %v34, 0
  %vm43 = vcmp.ne.s32.totalorder %v41, 0
  %vm44 = vcmp.lt.s32.totalorder %v34, 0
  %vm45 = vcmp.lt.s32.totalorder %v41, 0
  %vm46 = vmand %vm44, %vm42
  %vm47 = vmand %vm45, %vm43
  %v48 = vadd.s32 %v34, 16
  %v49 = vadd.s32 %v41, 16
  %v50 = vsel %vm46, %v48, %v34
  %v51 = vsel %vm47, %v49, %v41
  %vm52 = vcmp.ge.s32.totalorder %v50, 1
  %vm53 = vcmp.ge.s32.totalorder %v51, 1
  %vm54 = vcmp.lt.s32.totalorder %v50, 15
  %vm55 = vcmp.lt.s32.totalorder %v51, 15
  %56 = vst [vmem:[#allocation2] sm:$0xf] 0.0
  %57 = vst [vmem:[#allocation2 + $0xc] sm:$0xf] 0.0
  loop: start=0, step=1, limit=2
  $region26: #{decoder_forward.1} parent=0 // loop_pre_header
    _
  $region27: #{decoder_forward.1} parent=0 // loop_header
    %s59 = sphi 0, %s63
    %p60 = scmp.ge.s32.totalorder %s59, 2
    %v64 = vphi 0.0, %v945
  $region28: #{decoder_forward.1} parent=0 // loop_header_branch
    %62 = sbr.rel (%p60) target = $region32
  $region29: #{decoder_forward.1} parent=0 // loop_body
    %s65 = smul.u32 %s59, 2
    %s66 = smul.addr %s65, 4
    %s67 = scalar_lea.vmem %s0, %s66
    %v68 = vld [vmem:[%s67] sm:$0xff]
    %69 = vst [vmem:[#allocation2 + $0x4] sm:$0xff] %v68
    %v70 = vld [vmem:[#allocation2] sm:$0xff]
    %v71 = vld [vmem:[#allocation2 + $0x8] sm:$0xf]
    %v72 = vld [vmem:[%s1] sm:$0x3]
    %s73 = scalar_lea.vmem %s1, 6
    %v74 = vld [vmem:[%s73] sm:$0x3]
    %v77 = vcombine.high %v70, %v70
    %78 = vrot.lane.b32.xlu0 %v70, 1
    %v79 = vpop.permute.xlu0 %78
    %80 = vrot.lane.b32.xlu0 %v77, 1
    %v81 = vpop.permute.xlu0 %80
    %82 = vrot.lane.b32.xlu0 %v71, 1
    %v83 = vpop.permute.xlu0 %82
    %vm84 = vcmask 7168
    %v85 = vsel %vm84, %v79, %v81
    %v86 = vsel %vm84, %v81, %v83
    %vm87 = vcmask 31744
    %v89 = vsel %vm87, %v74, 0
    %vm91 = vcmask 1043456
    %v92 = vsel %vm91, %v85, 0
    %v94 = vsel %vm91, %v86, 0
    %96 = vmatprep.subr.mxu0 %v94
    %97 = vmatpush1.msra.mxu0 %v92
    %98 = vmatprep.subr.mxu0 0.0
    %99 = vmatpush1.msra.mxu0 0.0
    %100 = vmatprep.subr.mxu0 0.0
    %101 = vmatpush1.msra.mxu0 0.0
    %102 = vmatprep.subr.mxu0 0.0
    %103 = vmatpush1.msra.mxu0 0.0
    %104 = vmatprep.subr.mxu0 0.0
    %105 = vmatpush1.msra.mxu0 0.0
    %106 = vmatprep.subr.mxu0 0.0
    %107 = vmatpush1.msra.mxu0 0.0
    %108 = vmatprep.subr.mxu0 0.0
    %109 = vmatpush1.msra.mxu0 0.0
    %110 = vmatprep.subr.mxu0 0.0
    %111 = vmatpush1.msra.mxu0 0.0
    %112 = vmatprep.subr.mxu0 0.0
    %113 = vmatpush1.msra.mxu0 0.0
    %114 = vmatprep.subr.mxu0 0.0
    %115 = vmatpush1.msra.mxu0 0.0
    %116 = vmatprep.subr.mxu0 0.0
    %117 = vmatpush1.msra.mxu0 0.0
    %118 = vmatprep.subr.mxu0 0.0
    %119 = vmatpush1.msra.mxu0 0.0
    %120 = vmatprep.subr.mxu0 0.0
    %121 = vmatpush1.msra.mxu0 0.0
    %122 = vmatprep.subr.mxu0 0.0
    %123 = vmatpush1.msra.mxu0 0.0
    %124 = vmatprep.subr.mxu0 0.0
    %125 = vmatpush1.msra.mxu0 0.0
    %126 = vmatprep.subr.mxu0 0.0
    %127 = vmatpush1.msra.mxu0 0.0
    %128 = vmatprep.subr.mxu0 0.0
    %129 = vmatpush1.msra.mxu0 0.0
    %130 = vmatprep.subr.mxu0 0.0
    %131 = vmatpush1.msra.mxu0 0.0
    %132 = vmatprep.subr.mxu0 0.0
    %133 = vmatpush1.msra.mxu0 0.0
    %134 = vmatprep.subr.mxu0 0.0
    %135 = vmatpush1.msra.mxu0 0.0
    %136 = vmatprep.subr.mxu0 0.0
    %137 = vmatpush1.msra.mxu0 0.0
    %138 = vmatprep.subr.mxu0 0.0
    %139 = vmatpush1.msra.mxu0 0.0
    %140 = vmatprep.subr.mxu0 0.0
    %141 = vmatpush1.msra.mxu0 0.0
    %142 = vmatprep.subr.mxu0 0.0
    %143 = vmatpush1.msra.mxu0 0.0
    %144 = vmatprep.subr.mxu0 0.0
    %145 = vmatpush1.msra.mxu0 0.0
    %146 = vmatprep.subr.mxu0 0.0
    %147 = vmatpush1.msra.mxu0 0.0
    %148 = vmatprep.subr.mxu0 0.0
    %149 = vmatpush1.msra.mxu0 0.0
    %150 = vmatprep.subr.mxu0 0.0
    %151 = vmatpush1.msra.mxu0 0.0
    %152 = vmatprep.subr.mxu0 0.0
    %153 = vmatpush1.msra.mxu0 0.0
    %154 = vmatprep.subr.mxu0 0.0
    %155 = vmatpush1.msra.mxu0 0.0
    %156 = vmatprep.subr.mxu0 0.0
    %157 = vmatpush1.msra.mxu0 0.0
    %158 = vmatprep.subr.mxu0 0.0
    %159 = vmatpush1.msra.mxu0 0.0
    %160 = vmatprep.mubr.f32.mxu0 0.0
    %161 = vmatmul.mubr.f32.gmra.mrb[0].mxu0 %v89
    %v162 = vpop.f32.mrb[0].mxu0
    %v163 = vadd.f32 0.0, %v162
    %v164 = vpop.f32.mrb[0].mxu0
    %v165 = vadd.f32 0.0, %v164
    %166 = vdwg.mxu0
    %167 = vrot.lane.b32.xlu0 %v70, 17
    %v168 = vpop.permute.xlu0 %167
    %169 = vrot.lane.b32.xlu0 %v77, 17
    %v170 = vpop.permute.xlu0 %169
    %171 = vrot.lane.b32.xlu0 %v71, 17
    %v172 = vpop.permute.xlu0 %171
    %vm173 = vcmask 138240
    %v174 = vsel %vm173, %v168, %v170
    %v175 = vsel %vm173, %v170, %v172
    %v177 = vsel %vm87, %v72, 0
    %v179 = vsel %vm91, %v174, 0
    %v181 = vsel %vm91, %v175, 0
    %183 = vmatprep.subr.mxu0 %v181
    %184 = vmatpush1.msra.mxu0 %v179
    %185 = vmatprep.subr.mxu0 0.0
    %186 = vmatpush1.msra.mxu0 0.0
    %187 = vmatprep.subr.mxu0 0.0
    %188 = vmatpush1.msra.mxu0 0.0
    %189 = vmatprep.subr.mxu0 0.0
    %190 = vmatpush1.msra.mxu0 0.0
    %191 = vmatprep.subr.mxu0 0.0
    %192 = vmatpush1.msra.mxu0 0.0
    %193 = vmatprep.subr.mxu0 0.0
    %194 = vmatpush1.msra.mxu0 0.0
    %195 = vmatprep.subr.mxu0 0.0
    %196 = vmatpush1.msra.mxu0 0.0
    %197 = vmatprep.subr.mxu0 0.0
    %198 = vmatpush1.msra.mxu0 0.0
    %199 = vmatprep.subr.mxu0 0.0
    %200 = vmatpush1.msra.mxu0 0.0
    %201 = vmatprep.subr.mxu0 0.0
    %202 = vmatpush1.msra.mxu0 0.0
    %203 = vmatprep.subr.mxu0 0.0
    %204 = vmatpush1.msra.mxu0 0.0
    %205 = vmatprep.subr.mxu0 0.0
    %206 = vmatpush1.msra.mxu0 0.0
    %207 = vmatprep.subr.mxu0 0.0
    %208 = vmatpush1.msra.mxu0 0.0
    %209 = vmatprep.subr.mxu0 0.0
    %210 = vmatpush1.msra.mxu0 0.0
    %211 = vmatprep.subr.mxu0 0.0
    %212 = vmatpush1.msra.mxu0 0.0
    %213 = vmatprep.subr.mxu0 0.0
    %214 = vmatpush1.msra.mxu0 0.0
    %215 = vmatprep.subr.mxu0 0.0
    %216 = vmatpush1.msra.mxu0 0.0
    %217 = vmatprep.subr.mxu0 0.0
    %218 = vmatpush1.msra.mxu0 0.0
    %219 = vmatprep.subr.mxu0 0.0
    %220 = vmatpush1.msra.mxu0 0.0
    %221 = vmatprep.subr.mxu0 0.0
    %222 = vmatpush1.msra.mxu0 0.0
    %223 = vmatprep.subr.mxu0 0.0
    %224 = vmatpush1.msra.mxu0 0.0
    %225 = vmatprep.subr.mxu0 0.0
    %226 = vmatpush1.msra.mxu0 0.0
    %227 = vmatprep.subr.mxu0 0.0
    %228 = vmatpush1.msra.mxu0 0.0
    %229 = vmatprep.subr.mxu0 0.0
    %230 = vmatpush1.msra.mxu0 0.0
    %231 = vmatprep.subr.mxu0 0.0
    %232 = vmatpush1.msra.mxu0 0.0
    %233 = vmatprep.subr.mxu0 0.0
    %234 = vmatpush1.msra.mxu0 0.0
    %235 = vmatprep.subr.mxu0 0.0
    %236 = vmatpush1.msra.mxu0 0.0
    %237 = vmatprep.subr.mxu0 0.0
    %238 = vmatpush1.msra.mxu0 0.0
    %239 = vmatprep.subr.mxu0 0.0
    %240 = vmatpush1.msra.mxu0 0.0
    %241 = vmatprep.subr.mxu0 0.0
    %242 = vmatpush1.msra.mxu0 0.0
    %243 = vmatprep.subr.mxu0 0.0
    %244 = vmatpush1.msra.mxu0 0.0
    %245 = vmatprep.subr.mxu0 0.0
    %246 = vmatpush1.msra.mxu0 0.0
    %247 = vmatprep.mubr.f32.mxu0 0.0
    %248 = vmatmul.mubr.f32.gmra.mrb[0].mxu0 %v177
    %v249 = vpop.f32.mrb[0].mxu0
    %v250 = vadd.f32 %v163, %v249
    %v251 = vpop.f32.mrb[0].mxu0
    %v252 = vadd.f32 %v165, %v251
    %253 = vdwg.mxu0
    %v254 = vld [vmem:[#allocation2 + $0x4] sm:$0xff]
    %v255 = vld [vmem:[#allocation2 + $0xc] sm:$0xf]
    %s256 = scalar_lea.vmem %s1, 12
    %v257 = vld [vmem:[%s256] sm:$0x3]
    %v260 = vcombine.high %v254, %v254
    %261 = vrot.lane.b32.xlu0 %v254, 113
    %v262 = vpop.permute.xlu0 %261
    %263 = vrot.lane.b32.xlu0 %v260, 113
    %v264 = vpop.permute.xlu0 %263
    %265 = vrot.lane.b32.xlu0 %v255, 113
    %v266 = vpop.permute.xlu0 %265
    %vm267 = vcmask 924672
    %v268 = vsel %vm267, %v262, %v264
    %v269 = vsel %vm267, %v264, %v266
    %v271 = vsel %vm87, %v257, 0
    %v273 = vsel %vm91, %v268, 0
    %v275 = vsel %vm91, %v269, 0
    %277 = vmatprep.subr.mxu0 %v275
    %278 = vmatpush1.msra.mxu0 %v273
    %279 = vmatprep.subr.mxu0 0.0
    %280 = vmatpush1.msra.mxu0 0.0
    %281 = vmatprep.subr.mxu0 0.0
    %282 = vmatpush1.msra.mxu0 0.0
    %283 = vmatprep.subr.mxu0 0.0
    %284 = vmatpush1.msra.mxu0 0.0
    %285 = vmatprep.subr.mxu0 0.0
    %286 = vmatpush1.msra.mxu0 0.0
    %287 = vmatprep.subr.mxu0 0.0
    %288 = vmatpush1.msra.mxu0 0.0
    %289 = vmatprep.subr.mxu0 0.0
    %290 = vmatpush1.msra.mxu0 0.0
    %291 = vmatprep.subr.mxu0 0.0
    %292 = vmatpush1.msra.mxu0 0.0
    %293 = vmatprep.subr.mxu0 0.0
    %294 = vmatpush1.msra.mxu0 0.0
    %295 = vmatprep.subr.mxu0 0.0
    %296 = vmatpush1.msra.mxu0 0.0
    %297 = vmatprep.subr.mxu0 0.0
    %298 = vmatpush1.msra.mxu0 0.0
    %299 = vmatprep.subr.mxu0 0.0
    %300 = vmatpush1.msra.mxu0 0.0
    %301 = vmatprep.subr.mxu0 0.0
    %302 = vmatpush1.msra.mxu0 0.0
    %303 = vmatprep.subr.mxu0 0.0
    %304 = vmatpush1.msra.mxu0 0.0
    %305 = vmatprep.subr.mxu0 0.0
    %306 = vmatpush1.msra.mxu0 0.0
    %307 = vmatprep.subr.mxu0 0.0
    %308 = vmatpush1.msra.mxu0 0.0
    %309 = vmatprep.subr.mxu0 0.0
    %310 = vmatpush1.msra.mxu0 0.0
    %311 = vmatprep.subr.mxu0 0.0
    %312 = vmatpush1.msra.mxu0 0.0
    %313 = vmatprep.subr.mxu0 0.0
    %314 = vmatpush1.msra.mxu0 0.0
    %315 = vmatprep.subr.mxu0 0.0
    %316 = vmatpush1.msra.mxu0 0.0
    %317 = vmatprep.subr.mxu0 0.0
    %318 = vmatpush1.msra.mxu0 0.0
    %319 = vmatprep.subr.mxu0 0.0
    %320 = vmatpush1.msra.mxu0 0.0
    %321 = vmatprep.subr.mxu0 0.0
    %322 = vmatpush1.msra.mxu0 0.0
    %323 = vmatprep.subr.mxu0 0.0
    %324 = vmatpush1.msra.mxu0 0.0
    %325 = vmatprep.subr.mxu0 0.0
    %326 = vmatpush1.msra.mxu0 0.0
    %327 = vmatprep.subr.mxu0 0.0
    %328 = vmatpush1.msra.mxu0 0.0
    %329 = vmatprep.subr.mxu0 0.0
    %330 = vmatpush1.msra.mxu0 0.0
    %331 = vmatprep.subr.mxu0 0.0
    %332 = vmatpush1.msra.mxu0 0.0
    %333 = vmatprep.subr.mxu0 0.0
    %334 = vmatpush1.msra.mxu0 0.0
    %335 = vmatprep.subr.mxu0 0.0
    %336 = vmatpush1.msra.mxu0 0.0
    %337 = vmatprep.subr.mxu0 0.0
    %338 = vmatpush1.msra.mxu0 0.0
    %339 = vmatprep.subr.mxu0 0.0
    %340 = vmatpush1.msra.mxu0 0.0
    %341 = vmatprep.mubr.f32.mxu0 0.0
    %342 = vmatmul.mubr.f32.gmra.mrb[0].mxu0 %v271
    %v343 = vpop.f32.mrb[0].mxu0
    %v344 = vadd.f32 0.0, %v343
    %v345 = vpop.f32.mrb[0].mxu0
    %v346 = vadd.f32 0.0, %v345
    %347 = vdwg.mxu0
    %v348 = vadd.f32 %v250, %v344
    %v349 = vadd.f32 %v252, %v346
    %v350 = vsel %vm52, 1, 0
    %v351 = vsel %vm53, 1, 0
    %vm352 = vcmp.eq.s32.totalorder %v350, 1
    %vm353 = vcmp.eq.s32.totalorder %v351, 1
    %v354 = vsel %vm352, %v348, 0.0
    %v355 = vsel %vm353, %v349, 0.0
    %v356 = vadd.f32 %v354, 0.0
    %v357 = vadd.f32 %v355, 0.0
    %v358 = vld [vmem:[#allocation2] sm:$0xff]
    %v359 = vld [vmem:[#allocation2 + $0x8] sm:$0xf]
    %s360 = scalar_lea.vmem %s1, 2
    %v361 = vld [vmem:[%s360] sm:$0x3]
    %v362 = vld [vmem:[#allocation2 + $0x4] sm:$0xff]
    %s363 = scalar_lea.vmem %s1, 8
    %v364 = vld [vmem:[%s363] sm:$0x3]
    %v366 = vcombine.high %v362, %v362
    %v368 = vsel %vm87, %v364, 0
    %v370 = vsel %vm91, %v362, 0
    %v372 = vsel %vm91, %v366, 0
    %374 = vmatprep.subr.mxu0 %v372
    %375 = vmatpush1.msra.mxu0 %v370
    %376 = vmatprep.subr.mxu0 0.0
    %377 = vmatpush1.msra.mxu0 0.0
    %378 = vmatprep.subr.mxu0 0.0
    %379 = vmatpush1.msra.mxu0 0.0
    %380 = vmatprep.subr.mxu0 0.0
    %381 = vmatpush1.msra.mxu0 0.0
    %382 = vmatprep.subr.mxu0 0.0
    %383 = vmatpush1.msra.mxu0 0.0
    %384 = vmatprep.subr.mxu0 0.0
    %385 = vmatpush1.msra.mxu0 0.0
    %386 = vmatprep.subr.mxu0 0.0
    %387 = vmatpush1.msra.mxu0 0.0
    %388 = vmatprep.subr.mxu0 0.0
    %389 = vmatpush1.msra.mxu0 0.0
    %390 = vmatprep.subr.mxu0 0.0
    %391 = vmatpush1.msra.mxu0 0.0
    %392 = vmatprep.subr.mxu0 0.0
    %393 = vmatpush1.msra.mxu0 0.0
    %394 = vmatprep.subr.mxu0 0.0
    %395 = vmatpush1.msra.mxu0 0.0
    %396 = vmatprep.subr.mxu0 0.0
    %397 = vmatpush1.msra.mxu0 0.0
    %398 = vmatprep.subr.mxu0 0.0
    %399 = vmatpush1.msra.mxu0 0.0
    %400 = vmatprep.subr.mxu0 0.0
    %401 = vmatpush1.msra.mxu0 0.0
    %402 = vmatprep.subr.mxu0 0.0
    %403 = vmatpush1.msra.mxu0 0.0
    %404 = vmatprep.subr.mxu0 0.0
    %405 = vmatpush1.msra.mxu0 0.0
    %406 = vmatprep.subr.mxu0 0.0
    %407 = vmatpush1.msra.mxu0 0.0
    %408 = vmatprep.subr.mxu0 0.0
    %409 = vmatpush1.msra.mxu0 0.0
    %410 = vmatprep.subr.mxu0 0.0
    %411 = vmatpush1.msra.mxu0 0.0
    %412 = vmatprep.subr.mxu0 0.0
    %413 = vmatpush1.msra.mxu0 0.0
    %414 = vmatprep.subr.mxu0 0.0
    %415 = vmatpush1.msra.mxu0 0.0
    %416 = vmatprep.subr.mxu0 0.0
    %417 = vmatpush1.msra.mxu0 0.0
    %418 = vmatprep.subr.mxu0 0.0
    %419 = vmatpush1.msra.mxu0 0.0
    %420 = vmatprep.subr.mxu0 0.0
    %421 = vmatpush1.msra.mxu0 0.0
    %422 = vmatprep.subr.mxu0 0.0
    %423 = vmatpush1.msra.mxu0 0.0
    %424 = vmatprep.subr.mxu0 0.0
    %425 = vmatpush1.msra.mxu0 0.0
    %426 = vmatprep.subr.mxu0 0.0
    %427 = vmatpush1.msra.mxu0 0.0
    %428 = vmatprep.subr.mxu0 0.0
    %429 = vmatpush1.msra.mxu0 0.0
    %430 = vmatprep.subr.mxu0 0.0
    %431 = vmatpush1.msra.mxu0 0.0
    %432 = vmatprep.subr.mxu0 0.0
    %433 = vmatpush1.msra.mxu0 0.0
    %434 = vmatprep.subr.mxu0 0.0
    %435 = vmatpush1.msra.mxu0 0.0
    %436 = vmatprep.subr.mxu0 0.0
    %437 = vmatpush1.msra.mxu0 0.0
    %438 = vmatprep.mubr.f32.mxu0 0.0
    %439 = vmatmul.mubr.f32.gmra.mrb[0].mxu0 %v368
    %v440 = vpop.f32.mrb[0].mxu0
    %v441 = vadd.f32 0.0, %v440
    %v442 = vpop.f32.mrb[0].mxu0
    %v443 = vadd.f32 0.0, %v442
    %444 = vdwg.mxu0
    %v447 = vcombine.high %v358, %v358
    %448 = vrot.lane.b32.xlu0 %v358, 16
    %v449 = vpop.permute.xlu0 %448
    %450 = vrot.lane.b32.xlu0 %v447, 16
    %v451 = vpop.permute.xlu0 %450
    %452 = vrot.lane.b32.xlu0 %v359, 16
    %v453 = vpop.permute.xlu0 %452
    %vm454 = vcmask 130048
    %v455 = vsel %vm454, %v449, %v451
    %v456 = vsel %vm454, %v451, %v453
    %v458 = vsel %vm87, %v361, 0
    %v460 = vsel %vm91, %v455, 0
    %v462 = vsel %vm91, %v456, 0
    %464 = vmatprep.subr.mxu0 %v462
    %465 = vmatpush1.msra.mxu0 %v460
    %466 = vmatprep.subr.mxu0 0.0
    %467 = vmatpush1.msra.mxu0 0.0
    %468 = vmatprep.subr.mxu0 0.0
    %469 = vmatpush1.msra.mxu0 0.0
    %470 = vmatprep.subr.mxu0 0.0
    %471 = vmatpush1.msra.mxu0 0.0
    %472 = vmatprep.subr.mxu0 0.0
    %473 = vmatpush1.msra.mxu0 0.0
    %474 = vmatprep.subr.mxu0 0.0
    %475 = vmatpush1.msra.mxu0 0.0
    %476 = vmatprep.subr.mxu0 0.0
    %477 = vmatpush1.msra.mxu0 0.0
    %478 = vmatprep.subr.mxu0 0.0
    %479 = vmatpush1.msra.mxu0 0.0
    %480 = vmatprep.subr.mxu0 0.0
    %481 = vmatpush1.msra.mxu0 0.0
    %482 = vmatprep.subr.mxu0 0.0
    %483 = vmatpush1.msra.mxu0 0.0
    %484 = vmatprep.subr.mxu0 0.0
    %485 = vmatpush1.msra.mxu0 0.0
    %486 = vmatprep.subr.mxu0 0.0
    %487 = vmatpush1.msra.mxu0 0.0
    %488 = vmatprep.subr.mxu0 0.0
    %489 = vmatpush1.msra.mxu0 0.0
    %490 = vmatprep.subr.mxu0 0.0
    %491 = vmatpush1.msra.mxu0 0.0
    %492 = vmatprep.subr.mxu0 0.0
    %493 = vmatpush1.msra.mxu0 0.0
    %494 = vmatprep.subr.mxu0 0.0
    %495 = vmatpush1.msra.mxu0 0.0
    %496 = vmatprep.subr.mxu0 0.0
    %497 = vmatpush1.msra.mxu0 0.0
    %498 = vmatprep.subr.mxu0 0.0
    %499 = vmatpush1.msra.mxu0 0.0
    %500 = vmatprep.subr.mxu0 0.0
    %501 = vmatpush1.msra.mxu0 0.0
    %502 = vmatprep.subr.mxu0 0.0
    %503 = vmatpush1.msra.mxu0 0.0
    %504 = vmatprep.subr.mxu0 0.0
    %505 = vmatpush1.msra.mxu0 0.0
    %506 = vmatprep.subr.mxu0 0.0
    %507 = vmatpush1.msra.mxu0 0.0
    %508 = vmatprep.subr.mxu0 0.0
    %509 = vmatpush1.msra.mxu0 0.0
    %510 = vmatprep.subr.mxu0 0.0
    %511 = vmatpush1.msra.mxu0 0.0
    %512 = vmatprep.subr.mxu0 0.0
    %513 = vmatpush1.msra.mxu0 0.0
    %514 = vmatprep.subr.mxu0 0.0
    %515 = vmatpush1.msra.mxu0 0.0
    %516 = vmatprep.subr.mxu0 0.0
    %517 = vmatpush1.msra.mxu0 0.0
    %518 = vmatprep.subr.mxu0 0.0
    %519 = vmatpush1.msra.mxu0 0.0
    %520 = vmatprep.subr.mxu0 0.0
    %521 = vmatpush1.msra.mxu0 0.0
    %522 = vmatprep.subr.mxu0 0.0
    %523 = vmatpush1.msra.mxu0 0.0
    %524 = vmatprep.subr.mxu0 0.0
    %525 = vmatpush1.msra.mxu0 0.0
    %526 = vmatprep.subr.mxu0 0.0
    %527 = vmatpush1.msra.mxu0 0.0
    %528 = vmatprep.mubr.f32.mxu0 0.0
    %529 = vmatmul.mubr.f32.gmra.mrb[0].mxu0 %v458
    %v530 = vpop.f32.mrb[0].mxu0
    %v531 = vadd.f32 %v441, %v530
    %v532 = vpop.f32.mrb[0].mxu0
    %v533 = vadd.f32 %v443, %v532
    %534 = vdwg.mxu0
    %v535 = vld [vmem:[#allocation2 + $0x4] sm:$0xff]
    %v536 = vld [vmem:[#allocation2 + $0xc] sm:$0xf]
    %s537 = scalar_lea.vmem %s1, 14
    %v538 = vld [vmem:[%s537] sm:$0x3]
    %v541 = vcombine.high %v535, %v535
    %542 = vrot.lane.b32.xlu0 %v535, 112
    %v543 = vpop.permute.xlu0 %542
    %544 = vrot.lane.b32.xlu0 %v541, 112
    %v545 = vpop.permute.xlu0 %544
    %546 = vrot.lane.b32.xlu0 %v536, 112
    %v547 = vpop.permute.xlu0 %546
    %vm548 = vcmask 916480
    %v549 = vsel %vm548, %v543, %v545
    %v550 = vsel %vm548, %v545, %v547
    %v552 = vsel %vm87, %v538, 0
    %v554 = vsel %vm91, %v549, 0
    %v556 = vsel %vm91, %v550, 0
    %558 = vmatprep.subr.mxu0 %v556
    %559 = vmatpush1.msra.mxu0 %v554
    %560 = vmatprep.subr.mxu0 0.0
    %561 = vmatpush1.msra.mxu0 0.0
    %562 = vmatprep.subr.mxu0 0.0
    %563 = vmatpush1.msra.mxu0 0.0
    %564 = vmatprep.subr.mxu0 0.0
    %565 = vmatpush1.msra.mxu0 0.0
    %566 = vmatprep.subr.mxu0 0.0
    %567 = vmatpush1.msra.mxu0 0.0
    %568 = vmatprep.subr.mxu0 0.0
    %569 = vmatpush1.msra.mxu0 0.0
    %570 = vmatprep.subr.mxu0 0.0
    %571 = vmatpush1.msra.mxu0 0.0
    %572 = vmatprep.subr.mxu0 0.0
    %573 = vmatpush1.msra.mxu0 0.0
    %574 = vmatprep.subr.mxu0 0.0
    %575 = vmatpush1.msra.mxu0 0.0
    %576 = vmatprep.subr.mxu0 0.0
    %577 = vmatpush1.msra.mxu0 0.0
    %578 = vmatprep.subr.mxu0 0.0
    %579 = vmatpush1.msra.mxu0 0.0
    %580 = vmatprep.subr.mxu0 0.0
    %581 = vmatpush1.msra.mxu0 0.0
    %582 = vmatprep.subr.mxu0 0.0
    %583 = vmatpush1.msra.mxu0 0.0
    %584 = vmatprep.subr.mxu0 0.0
    %585 = vmatpush1.msra.mxu0 0.0
    %586 = vmatprep.subr.mxu0 0.0
    %587 = vmatpush1.msra.mxu0 0.0
    %588 = vmatprep.subr.mxu0 0.0
    %589 = vmatpush1.msra.mxu0 0.0
    %590 = vmatprep.subr.mxu0 0.0
    %591 = vmatpush1.msra.mxu0 0.0
    %592 = vmatprep.subr.mxu0 0.0
    %593 = vmatpush1.msra.mxu0 0.0
    %594 = vmatprep.subr.mxu0 0.0
    %595 = vmatpush1.msra.mxu0 0.0
    %596 = vmatprep.subr.mxu0 0.0
    %597 = vmatpush1.msra.mxu0 0.0
    %598 = vmatprep.subr.mxu0 0.0
    %599 = vmatpush1.msra.mxu0 0.0
    %600 = vmatprep.subr.mxu0 0.0
    %601 = vmatpush1.msra.mxu0 0.0
    %602 = vmatprep.subr.mxu0 0.0
    %603 = vmatpush1.msra.mxu0 0.0
    %604 = vmatprep.subr.mxu0 0.0
    %605 = vmatpush1.msra.mxu0 0.0
    %606 = vmatprep.subr.mxu0 0.0
    %607 = vmatpush1.msra.mxu0 0.0
    %608 = vmatprep.subr.mxu0 0.0
    %609 = vmatpush1.msra.mxu0 0.0
    %610 = vmatprep.subr.mxu0 0.0
    %611 = vmatpush1.msra.mxu0 0.0
    %612 = vmatprep.subr.mxu0 0.0
    %613 = vmatpush1.msra.mxu0 0.0
    %614 = vmatprep.subr.mxu0 0.0
    %615 = vmatpush1.msra.mxu0 0.0
    %616 = vmatprep.subr.mxu0 0.0
    %617 = vmatpush1.msra.mxu0 0.0
    %618 = vmatprep.subr.mxu0 0.0
    %619 = vmatpush1.msra.mxu0 0.0
    %620 = vmatprep.subr.mxu0 0.0
    %621 = vmatpush1.msra.mxu0 0.0
    %622 = vmatprep.mubr.f32.mxu0 0.0
    %623 = vmatmul.mubr.f32.gmra.mrb[0].mxu0 %v552
    %v624 = vpop.f32.mrb[0].mxu0
    %v625 = vadd.f32 0.0, %v624
    %v626 = vpop.f32.mrb[0].mxu0
    %v627 = vadd.f32 0.0, %v626
    %628 = vdwg.mxu0
    %v629 = vadd.f32 %v531, %v625
    %v630 = vadd.f32 %v533, %v627
    %v631 = vadd.f32 %v356, %v629
    %v632 = vadd.f32 %v357, %v630
    %v633 = vld [vmem:[#allocation2] sm:$0xff]
    %v634 = vld [vmem:[#allocation2 + $0x8] sm:$0xf]
    %s635 = scalar_lea.vmem %s1, 4
    %v636 = vld [vmem:[%s635] sm:$0x3]
    %v637 = vld [vmem:[#allocation2 + $0x4] sm:$0xff]
    %v638 = vld [vmem:[#allocation2 + $0xc] sm:$0xf]
    %s639 = scalar_lea.vmem %s1, 10
    %v640 = vld [vmem:[%s639] sm:$0x3]
    %v643 = vcombine.high %v637, %v637
    %644 = vrot.lane.b32.xlu0 %v637, 127
    %v645 = vpop.permute.xlu0 %644
    %646 = vrot.lane.b32.xlu0 %v643, 127
    %v647 = vpop.permute.xlu0 %646
    %648 = vrot.lane.b32.xlu0 %v638, 127
    %v649 = vpop.permute.xlu0 %648
    %vm650 = vcmask 1039360
    %v651 = vsel %vm650, %v645, %v647
    %v652 = vsel %vm650, %v647, %v649
    %v654 = vsel %vm87, %v640, 0
    %v656 = vsel %vm91, %v651, 0
    %v658 = vsel %vm91, %v652, 0
    %660 = vmatprep.subr.mxu0 %v658
    %661 = vmatpush1.msra.mxu0 %v656
    %662 = vmatprep.subr.mxu0 0.0
    %663 = vmatpush1.msra.mxu0 0.0
    %664 = vmatprep.subr.mxu0 0.0
    %665 = vmatpush1.msra.mxu0 0.0
    %666 = vmatprep.subr.mxu0 0.0
    %667 = vmatpush1.msra.mxu0 0.0
    %668 = vmatprep.subr.mxu0 0.0
    %669 = vmatpush1.msra.mxu0 0.0
    %670 = vmatprep.subr.mxu0 0.0
    %671 = vmatpush1.msra.mxu0 0.0
    %672 = vmatprep.subr.mxu0 0.0
    %673 = vmatpush1.msra.mxu0 0.0
    %674 = vmatprep.subr.mxu0 0.0
    %675 = vmatpush1.msra.mxu0 0.0
    %676 = vmatprep.subr.mxu0 0.0
    %677 = vmatpush1.msra.mxu0 0.0
    %678 = vmatprep.subr.mxu0 0.0
    %679 = vmatpush1.msra.mxu0 0.0
    %680 = vmatprep.subr.mxu0 0.0
    %681 = vmatpush1.msra.mxu0 0.0
    %682 = vmatprep.subr.mxu0 0.0
    %683 = vmatpush1.msra.mxu0 0.0
    %684 = vmatprep.subr.mxu0 0.0
    %685 = vmatpush1.msra.mxu0 0.0
    %686 = vmatprep.subr.mxu0 0.0
    %687 = vmatpush1.msra.mxu0 0.0
    %688 = vmatprep.subr.mxu0 0.0
    %689 = vmatpush1.msra.mxu0 0.0
    %690 = vmatprep.subr.mxu0 0.0
    %691 = vmatpush1.msra.mxu0 0.0
    %692 = vmatprep.subr.mxu0 0.0
    %693 = vmatpush1.msra.mxu0 0.0
    %694 = vmatprep.subr.mxu0 0.0
    %695 = vmatpush1.msra.mxu0 0.0
    %696 = vmatprep.subr.mxu0 0.0
    %697 = vmatpush1.msra.mxu0 0.0
    %698 = vmatprep.subr.mxu0 0.0
    %699 = vmatpush1.msra.mxu0 0.0
    %700 = vmatprep.subr.mxu0 0.0
    %701 = vmatpush1.msra.mxu0 0.0
    %702 = vmatprep.subr.mxu0 0.0
    %703 = vmatpush1.msra.mxu0 0.0
    %704 = vmatprep.subr.mxu0 0.0
    %705 = vmatpush1.msra.mxu0 0.0
    %706 = vmatprep.subr.mxu0 0.0
    %707 = vmatpush1.msra.mxu0 0.0
    %708 = vmatprep.subr.mxu0 0.0
    %709 = vmatpush1.msra.mxu0 0.0
    %710 = vmatprep.subr.mxu0 0.0
    %711 = vmatpush1.msra.mxu0 0.0
    %712 = vmatprep.subr.mxu0 0.0
    %713 = vmatpush1.msra.mxu0 0.0
    %714 = vmatprep.subr.mxu0 0.0
    %715 = vmatpush1.msra.mxu0 0.0
    %716 = vmatprep.subr.mxu0 0.0
    %717 = vmatpush1.msra.mxu0 0.0
    %718 = vmatprep.subr.mxu0 0.0
    %719 = vmatpush1.msra.mxu0 0.0
    %720 = vmatprep.subr.mxu0 0.0
    %721 = vmatpush1.msra.mxu0 0.0
    %722 = vmatprep.subr.mxu0 0.0
    %723 = vmatpush1.msra.mxu0 0.0
    %724 = vmatprep.mubr.f32.mxu0 0.0
    %725 = vmatmul.mubr.f32.gmra.mrb[0].mxu0 %v654
    %v726 = vpop.f32.mrb[0].mxu0
    %v727 = vadd.f32 0.0, %v726
    %v728 = vpop.f32.mrb[0].mxu0
    %v729 = vadd.f32 0.0, %v728
    %730 = vdwg.mxu0
    %v733 = vcombine.high %v633, %v633
    %734 = vrot.lane.b32.xlu0 %v633, 15
    %v735 = vpop.permute.xlu0 %734
    %736 = vrot.lane.b32.xlu0 %v733, 15
    %v737 = vpop.permute.xlu0 %736
    %738 = vrot.lane.b32.xlu0 %v634, 15
    %v739 = vpop.permute.xlu0 %738
    %vm740 = vcmask 121856
    %v741 = vsel %vm740, %v735, %v737
    %v742 = vsel %vm740, %v737, %v739
    %v744 = vsel %vm87, %v636, 0
    %v746 = vsel %vm91, %v741, 0
    %v748 = vsel %vm91, %v742, 0
    %750 = vmatprep.subr.mxu0 %v748
    %751 = vmatpush1.msra.mxu0 %v746
    %752 = vmatprep.subr.mxu0 0.0
    %753 = vmatpush1.msra.mxu0 0.0
    %754 = vmatprep.subr.mxu0 0.0
    %755 = vmatpush1.msra.mxu0 0.0
    %756 = vmatprep.subr.mxu0 0.0
    %757 = vmatpush1.msra.mxu0 0.0
    %758 = vmatprep.subr.mxu0 0.0
    %759 = vmatpush1.msra.mxu0 0.0
    %760 = vmatprep.subr.mxu0 0.0
    %761 = vmatpush1.msra.mxu0 0.0
    %762 = vmatprep.subr.mxu0 0.0
    %763 = vmatpush1.msra.mxu0 0.0
    %764 = vmatprep.subr.mxu0 0.0
    %765 = vmatpush1.msra.mxu0 0.0
    %766 = vmatprep.subr.mxu0 0.0
    %767 = vmatpush1.msra.mxu0 0.0
    %768 = vmatprep.subr.mxu0 0.0
    %769 = vmatpush1.msra.mxu0 0.0
    %770 = vmatprep.subr.mxu0 0.0
    %771 = vmatpush1.msra.mxu0 0.0
    %772 = vmatprep.subr.mxu0 0.0
    %773 = vmatpush1.msra.mxu0 0.0
    %774 = vmatprep.subr.mxu0 0.0
    %775 = vmatpush1.msra.mxu0 0.0
    %776 = vmatprep.subr.mxu0 0.0
    %777 = vmatpush1.msra.mxu0 0.0
    %778 = vmatprep.subr.mxu0 0.0
    %779 = vmatpush1.msra.mxu0 0.0
    %780 = vmatprep.subr.mxu0 0.0
    %781 = vmatpush1.msra.mxu0 0.0
    %782 = vmatprep.subr.mxu0 0.0
    %783 = vmatpush1.msra.mxu0 0.0
    %784 = vmatprep.subr.mxu0 0.0
    %785 = vmatpush1.msra.mxu0 0.0
    %786 = vmatprep.subr.mxu0 0.0
    %787 = vmatpush1.msra.mxu0 0.0
    %788 = vmatprep.subr.mxu0 0.0
    %789 = vmatpush1.msra.mxu0 0.0
    %790 = vmatprep.subr.mxu0 0.0
    %791 = vmatpush1.msra.mxu0 0.0
    %792 = vmatprep.subr.mxu0 0.0
    %793 = vmatpush1.msra.mxu0 0.0
    %794 = vmatprep.subr.mxu0 0.0
    %795 = vmatpush1.msra.mxu0 0.0
    %796 = vmatprep.subr.mxu0 0.0
    %797 = vmatpush1.msra.mxu0 0.0
    %798 = vmatprep.subr.mxu0 0.0
    %799 = vmatpush1.msra.mxu0 0.0
    %800 = vmatprep.subr.mxu0 0.0
    %801 = vmatpush1.msra.mxu0 0.0
    %802 = vmatprep.subr.mxu0 0.0
    %803 = vmatpush1.msra.mxu0 0.0
    %804 = vmatprep.subr.mxu0 0.0
    %805 = vmatpush1.msra.mxu0 0.0
    %806 = vmatprep.subr.mxu0 0.0
    %807 = vmatpush1.msra.mxu0 0.0
    %808 = vmatprep.subr.mxu0 0.0
    %809 = vmatpush1.msra.mxu0 0.0
    %810 = vmatprep.subr.mxu0 0.0
    %811 = vmatpush1.msra.mxu0 0.0
    %812 = vmatprep.subr.mxu0 0.0
    %813 = vmatpush1.msra.mxu0 0.0
    %814 = vmatprep.mubr.f32.mxu0 0.0
    %815 = vmatmul.mubr.f32.gmra.mrb[0].mxu0 %v744
    %v816 = vpop.f32.mrb[0].mxu0
    %v817 = vadd.f32 %v727, %v816
    %v818 = vpop.f32.mrb[0].mxu0
    %v819 = vadd.f32 %v729, %v818
    %820 = vdwg.mxu0
    %v821 = vld [vmem:[#allocation2 + $0x4] sm:$0xff]
    %v822 = vld [vmem:[#allocation2 + $0xc] sm:$0xf]
    %s823 = scalar_lea.vmem %s1, 16
    %v824 = vld [vmem:[%s823] sm:$0x3]
    %v827 = vcombine.high %v821, %v821
    %828 = vrot.lane.b32.xlu0 %v821, 111
    %v829 = vpop.permute.xlu0 %828
    %830 = vrot.lane.b32.xlu0 %v827, 111
    %v831 = vpop.permute.xlu0 %830
    %832 = vrot.lane.b32.xlu0 %v822, 111
    %v833 = vpop.permute.xlu0 %832
    %vm834 = vcmask 908288
    %v835 = vsel %vm834, %v829, %v831
    %v836 = vsel %vm834, %v831, %v833
    %v838 = vsel %vm87, %v824, 0
    %v840 = vsel %vm91, %v835, 0
    %v842 = vsel %vm91, %v836, 0
    %844 = vmatprep.subr.mxu0 %v842
    %845 = vmatpush1.msra.mxu0 %v840
    %846 = vmatprep.subr.mxu0 0.0
    %847 = vmatpush1.msra.mxu0 0.0
    %848 = vmatprep.subr.mxu0 0.0
    %849 = vmatpush1.msra.mxu0 0.0
    %850 = vmatprep.subr.mxu0 0.0
    %851 = vmatpush1.msra.mxu0 0.0
    %852 = vmatprep.subr.mxu0 0.0
    %853 = vmatpush1.msra.mxu0 0.0
    %854 = vmatprep.subr.mxu0 0.0
    %855 = vmatpush1.msra.mxu0 0.0
    %856 = vmatprep.subr.mxu0 0.0
    %857 = vmatpush1.msra.mxu0 0.0
    %858 = vmatprep.subr.mxu0 0.0
    %859 = vmatpush1.msra.mxu0 0.0
    %860 = vmatprep.subr.mxu0 0.0
    %861 = vmatpush1.msra.mxu0 0.0
    %862 = vmatprep.subr.mxu0 0.0
    %863 = vmatpush1.msra.mxu0 0.0
    %864 = vmatprep.subr.mxu0 0.0
    %865 = vmatpush1.msra.mxu0 0.0
    %866 = vmatprep.subr.mxu0 0.0
    %867 = vmatpush1.msra.mxu0 0.0
    %868 = vmatprep.subr.mxu0 0.0
    %869 = vmatpush1.msra.mxu0 0.0
    %870 = vmatprep.subr.mxu0 0.0
    %871 = vmatpush1.msra.mxu0 0.0
    %872 = vmatprep.subr.mxu0 0.0
    %873 = vmatpush1.msra.mxu0 0.0
    %874 = vmatprep.subr.mxu0 0.0
    %875 = vmatpush1.msra.mxu0 0.0
    %876 = vmatprep.subr.mxu0 0.0
    %877 = vmatpush1.msra.mxu0 0.0
    %878 = vmatprep.subr.mxu0 0.0
    %879 = vmatpush1.msra.mxu0 0.0
    %880 = vmatprep.subr.mxu0 0.0
    %881 = vmatpush1.msra.mxu0 0.0
    %882 = vmatprep.subr.mxu0 0.0
    %883 = vmatpush1.msra.mxu0 0.0
    %884 = vmatprep.subr.mxu0 0.0
    %885 = vmatpush1.msra.mxu0 0.0
    %886 = vmatprep.subr.mxu0 0.0
    %887 = vmatpush1.msra.mxu0 0.0
    %888 = vmatprep.subr.mxu0 0.0
    %889 = vmatpush1.msra.mxu0 0.0
    %890 = vmatprep.subr.mxu0 0.0
    %891 = vmatpush1.msra.mxu0 0.0
    %892 = vmatprep.subr.mxu0 0.0
    %893 = vmatpush1.msra.mxu0 0.0
    %894 = vmatprep.subr.mxu0 0.0
    %895 = vmatpush1.msra.mxu0 0.0
    %896 = vmatprep.subr.mxu0 0.0
    %897 = vmatpush1.msra.mxu0 0.0
    %898 = vmatprep.subr.mxu0 0.0
    %899 = vmatpush1.msra.mxu0 0.0
    %900 = vmatprep.subr.mxu0 0.0
    %901 = vmatpush1.msra.mxu0 0.0
    %902 = vmatprep.subr.mxu0 0.0
    %903 = vmatpush1.msra.mxu0 0.0
    %904 = vmatprep.subr.mxu0 0.0
    %905 = vmatpush1.msra.mxu0 0.0
    %906 = vmatprep.subr.mxu0 0.0
    %907 = vmatpush1.msra.mxu0 0.0
    %908 = vmatprep.mubr.f32.mxu0 0.0
    %909 = vmatmul.mubr.f32.gmra.mrb[0].mxu0 %v838
    %v910 = vpop.f32.mrb[0].mxu0
    %v911 = vadd.f32 0.0, %v910
    %v912 = vpop.f32.mrb[0].mxu0
    %v913 = vadd.f32 0.0, %v912
    %914 = vdwg.mxu0
    %v915 = vadd.f32 %v817, %v911
    %v916 = vadd.f32 %v819, %v913
    %v917 = vsel %vm54, 1, 0
    %v918 = vsel %vm55, 1, 0
    %vm919 = vcmp.eq.s32.totalorder %v917, 1
    %vm920 = vcmp.eq.s32.totalorder %v918, 1
    %v921 = vsel %vm919, %v915, 0.0
    %v922 = vsel %vm920, %v916, 0.0
    %v923 = vadd.f32 %v631, %v921
    %v924 = vadd.f32 %v632, %v922
    %v927 = vcombine.low %v923, %v924
    %v929 = vunpack.c.l.s4 1983009808
    %v930 = vunpack.c.0.s8 %v929
    %v931 = vlaneseq
    %v932 = vshrl.u32 %v931, 7
    %v933 = vsub.s32 %v930, %v932
    %v934 = vrot.slane %v927, %v933
    %s936 = smul.addr %s65, 2
    %s937 = scalar_lea.vmem [#allocation3], %s936
    %938 = vst [vmem:[%s937] sm:$0xf] %v934
    %vm939 = vcmask 1041408
    %v940 = vsel %vm939, %v923, 0.0
    %v941 = vsel %vm939, %v924, 0.0
    %v942 = vadd.f32 %v940, %v941
    %943 = vadd.xlane.f32.xlu0 %v942
    %v944 = vpop.xlane.xlu0 %943
    %v945 = vadd.f32 %v64, %v944
  $region30: #{decoder_forward.1} parent=0 // loop_footer
    %s63 = sadd.s32 1, %s59
  $region31: #{decoder_forward.1} parent=0 // loop_footer_branch
    %58 = sbr.rel target = $region27
  $region32: #{decoder_forward.1} parent=0 // loop_exit
    _
  %v946 = vmul.f32 %v64, 0.001953125
  %v947 = vld [vmem:[#allocation3] sm:$0xf]
  %v948 = vld [vmem:[#allocation3 + $0x4] sm:$0xf]
  %v951 = vunpack.c.l.s4 269488144
  %v952 = vunpack.c.0.s8 %v951
  %v953 = vlaneseq
  %v954 = vshrl.u32 %v953, 7
  %v955 = vsub.s32 %v952, %v954
  %v956 = vrot.slane %v946, %v955
  %v958 = vsub.f32 %v947, %v956
  %v959 = vsub.f32 %v948, %v956
  %v960 = vmul.f32 %v958, %v958
  %v961 = vmul.f32 %v959, %v959
  %v965 = vunpack.c.l.s4 1983009808
  %v966 = vunpack.c.0.s8 %v965
  %v967 = vlaneseq
  %v968 = vshrl.u32 %v967, 7
  %v969 = vsub.s32 %v966, %v968
  %v970 = vrot.slane %v960, %v969
  %v971 = vcombine.high %v970, %v970
  %v973 = vunpack.c.l.s4 1983009808
  %v974 = vunpack.c.0.s8 %v973
  %v975 = vlaneseq
  %v976 = vshrl.u32 %v975, 7
  %v977 = vsub.s32 %v974, %v976
  %v978 = vrot.slane %v961, %v977
  %v979 = vcombine.high %v978, %v978
  %vm984 = vcmask 1041408
  %v985 = vsel %vm984, %v970, 0.0
  %v986 = vsel %vm984, %v971, 0.0
  %v987 = vadd.f32 %v985, %v986
  %988 = vadd.xlane.f32.xlu0 %v987
  %v989 = vpop.xlane.xlu0 %988
  %v990 = vsel %vm984, %v978, 0.0
  %v991 = vsel %vm984, %v979, 0.0
  %v992 = vadd.f32 %v990, %v991
  %993 = vadd.xlane.f32.xlu0 %v992
  %v994 = vpop.xlane.xlu0 %993
  %v995 = vsel %vm984, %v989, 0.0
  %v996 = vsel %vm984, %v994, 0.0
  %v997 = vadd.f32 %v995, %v996
  %v998 = vmul.f32 %v997, 0.001953125
  %v999 = vld [vmem:[%s2] sm:$0x3]
  %v1000 = vadd.f32 %v998, 1e-05
  %v1001 = vrsqrt.pop %v1000
  %v1002 = vmul.f32 %v999, %v1001
  %v1003 = vld [vmem:[%s3] sm:$0x3]
  %v1004 = vmul.f32 %v946, %v1002
  %v1005 = vsub.f32 %v1003, %v1004
  %1007 = vset.pattern.permute.xlu0 0
  %1008 = vperm.xlu0 %1007, %v1002
  %v1009 = vpop.permute.xlu0 %1008
  %v1011 = vunpack.c.l.s4 269488144
  %v1012 = vunpack.c.0.s8 %v1011
  %v1013 = vlaneseq
  %v1014 = vshrl.u32 %v1013, 7
  %v1015 = vsub.s32 %v1012, %v1014
  %v1016 = vrot.slane %v1009, %v1015
  %v1018 = vmul.f32 %v947, %v1016
  %v1019 = vmul.f32 %v948, %v1016
  %1021 = vset.pattern.permute.xlu0 0
  %1022 = vperm.xlu0 %1021, %v1005
  %v1023 = vpop.permute.xlu0 %1022
  %v1025 = vunpack.c.l.s4 269488144
  %v1026 = vunpack.c.0.s8 %v1025
  %v1027 = vlaneseq
  %v1028 = vshrl.u32 %v1027, 7
  %v1029 = vsub.s32 %v1026, %v1028
  %v1030 = vrot.slane %v1023, %v1029
  %v1032 = vadd.f32 %v1018, %v1030
  %v1033 = vadd.f32 %v1019, %v1030
  %v1034 = vmax.f32 %v1032, 0.0
  %v1035 = vmax.f32 %v1033, 0.0
  %v1036 = vld [vmem:[%s4] sm:$0x3]
  %1038 = vset.pattern.permute.xlu0 0
  %1039 = vperm.xlu0 %1038, %v1036
  %v1040 = vpop.permute.xlu0 %1039
  %v1042 = vunpack.c.l.s4 269488144
  %v1043 = vunpack.c.0.s8 %v1042
  %v1044 = vlaneseq
  %v1045 = vshrl.u32 %v1044, 7
  %v1046 = vsub.s32 %v1043, %v1045
  %v1047 = vrot.slane %v1040, %v1046
  %v1049 = vmul.f32 %v1034, %v1047
  %v1050 = vmul.f32 %v1035, %v1047
  %v1054 = vunpack.c.l.s4 1983009808
  %v1055 = vunpack.c.0.s8 %v1054
  %v1056 = vlaneseq
  %v1057 = vshrl.u32 %v1056, 7
  %v1058 = vsub.s32 %v1055, %v1057
  %v1059 = vrot.slane %v1049, %v1058
  %v1060 = vcombine.high %v1059, %v1059
  %v1062 = vunpack.c.l.s4 1983009808
  %v1063 = vunpack.c.0.s8 %v1062
  %v1064 = vlaneseq
  %v1065 = vshrl.u32 %v1064, 7
  %v1066 = vsub.s32 %v1063, %v1065
  %v1067 = vrot.slane %v1050, %v1066
  %v1068 = vcombine.high %v1067, %v1067
  %v1073 = vsel %vm984, %v1059, 0.0
  %v1074 = vrot.slane %v1073, 4
  %v1075 = vadd.f32 %v1073, %v1074
  %v1076 = vrot.slane %v1075, 2
  %v1077 = vadd.f32 %v1075, %v1076
  %v1078 = vrot.slane %v1077, 1
  %v1079 = vadd.f32 %v1077, %v1078
  %v1080 = vsel %vm984, %v1060, 0.0
  %v1081 = vrot.slane %v1080, 4
  %v1082 = vadd.f32 %v1080, %v1081
  %v1083 = vrot.slane %v1082, 2
  %v1084 = vadd.f32 %v1082, %v1083
  %v1085 = vrot.slane %v1084, 1
  %v1086 = vadd.f32 %v1084, %v1085
  %v1087 = vsel %vm984, %v1067, 0.0
  %v1088 = vrot.slane %v1087, 4
  %v1089 = vadd.f32 %v1087, %v1088
  %v1090 = vrot.slane %v1089, 2
  %v1091 = vadd.f32 %v1089, %v1090
  %v1092 = vrot.slane %v1091, 1
  %v1093 = vadd.f32 %v1091, %v1092
  %v1094 = vsel %vm984, %v1068, 0.0
  %v1095 = vrot.slane %v1094, 4
  %v1096 = vadd.f32 %v1094, %v1095
  %v1097 = vrot.slane %v1096, 2
  %v1098 = vadd.f32 %v1096, %v1097
  %v1099 = vrot.slane %v1098, 1
  %v1100 = vadd.f32 %v1098, %v1099
  %v1101 = vld [vmem:[#allocation4] sm:$0x1]
  %v1103 = vlaneseq
  %v1104 = vshrl.u32 %v1103, 7
  %v1105 = vsub.s32 0, %v1104
  %v1106 = vrot.slane %v1101, %v1105
  %1107 = vset.pattern.permute.xlu0 0
  %1108 = vperm.xlu0 %1107, %v1106
  %v1109 = vpop.permute.xlu0 %1108
  %v1111 = vadd.f32 %v1079, %v1109
  %v1112 = vadd.f32 %v1086, %v1109
  %v1113 = vadd.f32 %v1093, %v1109
  %v1114 = vadd.f32 %v1100, %v1109
  %v1119 = vcombine.low %v1111, %v1112
  %v1121 = vunpack.c.l.s4 1983009808
  %v1122 = vunpack.c.0.s8 %v1121
  %v1123 = vlaneseq
  %v1124 = vshrl.u32 %v1123, 7
  %v1125 = vsub.s32 %v1122, %v1124
  %v1126 = vrot.slane %v1119, %v1125
  %v1127 = vcombine.low %v1113, %v1114
  %v1129 = vunpack.c.l.s4 1983009808
  %v1130 = vunpack.c.0.s8 %v1129
  %v1131 = vlaneseq
  %v1132 = vshrl.u32 %v1131, 7
  %v1133 = vsub.s32 %v1130, %v1132
  %v1134 = vrot.slane %v1127, %v1133
  %vm1135 = vcmask 1044484
  %v1136 = vsel %vm1135, %v1126, %v1126
  %vm1137 = vcmask 1046534
  %v1138 = vsel %vm1137, %v1126, %v1136
  %v1139 = vrot.slane %v1134, 7
  %vm1140 = vcmask 1041409
  %v1141 = vsel %vm1140, %v1139, %v1138
  %vm1142 = vcmask 1043459
  %v1143 = vsel %vm1142, %v1139, %v1141
  %vm1144 = vcmask 1045509
  %v1145 = vsel %vm1144, %v1139, %v1143
  %vm1146 = vcmask 1047559
  %v1147 = vsel %vm1146, %v1139, %v1145
  %1149 = vst [vmem:[%s6] sm:$0xf] %v1147
  // Predicated region
  $region33: #{decoder_forward.1} parent=0 // pred_check
    _
  $region34: #{decoder_forward.1} parent=0 // pred_check_branch
    %1151 = sbr.rel (0) target = $region36
  $region35: #{decoder_forward.1} parent=0 // pred_region
    _
  $region36: #{decoder_forward.1} parent=0 // pred_fallthru
    _
  // Predicated region
  $region37: #{decoder_forward.1} parent=0 // pred_check
    _
  $region38: #{decoder_forward.1} parent=0 // pred_check_branch
    %1153 = sbr.rel (0) target = $region40
  $region39: #{decoder_forward.1} parent=0 // pred_region
    _
  $region40: #{decoder_forward.1} parent=0 // pred_fallthru
    _

</llo_original>
